<compile_context>
chip_gen: v5e
topology: v5e:2x2
jax: 0.10.0
libtpu: 0.0.40
codegen_flags: <defaults>
</compile_context>

<pallas_src>
import jax
import jax.numpy as jnp
from jax.experimental import pallas as pl
from jax.experimental.pallas import tpu as pltpu

# Module-level output sizes (the PyTorch source references globals size0/1/2).
SIZE0 = 10
SIZE1 = 12
SIZE2 = 8

LANES = 128          # keep the fused output width at exactly one MXU pass
MAX_TILE_B = 256     # batch-tile cap; small enough for v7x's 64 MiB VMEM at
                     # realistic widths (t tile = TILE_B*S*W*4 B, double-buffered)


def _round_up(x, m):
    return (x + m - 1) // m * m


def _psst_pool_heads_kernel(t_ref, mask_ref, w_ref, b_ref, y_ref, mem_ref):
    """Fused: masked mean pooling over seq + single fused-head matmul.

    t_ref:    (TILE_B, S, W)  transformer output tile
    mask_ref: (TILE_B, S)     float mask, 1.0 = padded position
    w_ref:    (W, NPAD)       concatenated + lane-padded head weights
    b_ref:    (1, NPAD)       concatenated + lane-padded head biases
    y_ref:    (TILE_B, NPAD)  fused head outputs (lane-dense)
    mem_ref:  (TILE_B, W)     pooled mem (also returned by PSST.forward)
    """
    t = t_ref[...]                                     # (TB, S, W) f32
    m = mask_ref[...]                                  # (TB, S)    f32
    keep = (1.0 - m)[:, :, None]                       # (TB, S, 1)

    # masked_fill(mask, 0) + sum over the sequence axis (sublane reduce, XLU)
    pooled = jnp.sum(t * keep, axis=1)                 # (TB, W)
    denom = jnp.float32(t.shape[1]) - jnp.sum(m, axis=1, keepdims=True)  # (TB,1)
    mem = pooled / denom                               # masked mean

    mem_ref[...] = mem.astype(mem_ref.dtype)

    # Single MXU pass for all heads + one lane-aligned bias add.
    y_ref[...] = (
        jnp.dot(mem, w_ref[...], preferred_element_type=jnp.float32)
        + b_ref[...]
    ).astype(y_ref.dtype)


def _fuse_head_params(params, multitask):
    """Concatenate head weights/biases along N and zero-pad to a lane multiple."""
    if multitask:
        ws = [params["w0"], params["w1"], params["w2"]]
        bs = [params["b0"], params["b1"], params["b2"]]
    else:
        ws = [params["w2"]]
        bs = [params["b2"]]
    w = jnp.concatenate(ws, axis=1)                    # (W, N)
    b = jnp.concatenate(bs, axis=1)                    # (1, N)
    n = w.shape[1]
    n_pad = _round_up(max(n, LANES), LANES)            # -> exactly 128 here
    w = jnp.pad(w, ((0, 0), (0, n_pad - n)))
    b = jnp.pad(b, ((0, 0), (0, n_pad - n)))
    sizes = tuple(x.shape[1] for x in ws)
    return w, b, sizes, n_pad


def psst_pool_and_heads(t_out, mask, params, multitask=True):
    """JAX wrapper mirroring PSST.forward downstream of the transformer.

    t_out: (B, S, W) float32 -- Transformer_structure(x, dist, mask) output
    mask:  (B, S)    bool    -- True marks padded sequence positions
    params: dict with wK (W, sizeK) and bK (1, sizeK)

    Returns (y0, y1, y2, mem) if multitask else (None, None, y2, mem).
    """
    B, S, W = t_out.shape
    mask_f = mask.astype(jnp.float32)
    w_f, b_f, sizes, n_pad = _fuse_head_params(params, multitask)

    # Batch padding/tiling: TILE_B is a multiple of 8 (f32 sublanes).
    tile_b = min(MAX_TILE_B, _round_up(B, 8))
    b_pad = _round_up(B, tile_b)
    if b_pad != B:
        # Padded rows: t=0, mask=0  ->  denom=S, mem=0, no NaN; sliced off below.
        t_out = jnp.pad(t_out, ((0, b_pad - B), (0, 0), (0, 0)))
        mask_f = jnp.pad(mask_f, ((0, b_pad - B), (0, 0)))

    grid = (b_pad // tile_b,)

    y, mem = pl.pallas_call(
        _psst_pool_heads_kernel,
        out_shape=(
            jax.ShapeDtypeStruct((b_pad, n_pad), t_out.dtype),
            jax.ShapeDtypeStruct((b_pad, W), t_out.dtype),
        ),
        grid=grid,
        in_specs=[
            pl.BlockSpec((tile_b, S, W), lambda i: (i, 0, 0)),
            pl.BlockSpec((tile_b, S), lambda i: (i, 0)),
            pl.BlockSpec((W, n_pad), lambda i: (0, 0)),   # weight stays resident
            pl.BlockSpec((1, n_pad), lambda i: (0, 0)),   # bias stays resident
        ],
        out_specs=(
            pl.BlockSpec((tile_b, n_pad), lambda i: (i, 0)),
            pl.BlockSpec((tile_b, W), lambda i: (i, 0)),
        ),
        compiler_params=pltpu.CompilerParams(
            dimension_semantics=("parallel",)),
    )(t_out, mask_f, w_f, b_f)

    y = y[:B]
    mem = mem[:B]

    if multitask:
        s0, s1, s2 = sizes
        y0 = y[:, :s0]
        y1 = y[:, s0:s0 + s1]
        y2 = y[:, s0 + s1:s0 + s1 + s2]
        return (y0, y1, y2, mem)
    else:
        (s2,) = sizes
        return (None, None, y[:, :s2], mem)


def init_params(key, width, size0=SIZE0, size1=SIZE1, size2=SIZE2,
                dtype=jnp.float32):
    """Deterministic parameter init (PyTorch-Linear-style uniform bounds).

    Weights stored as (width, out_features) so the kernel does y = mem @ W + b.
    """
    ks = jax.random.split(key, 6)
    bound = 1.0 / jnp.sqrt(width)

    def u(k, shape):
        return jax.random.uniform(k, shape, dtype, minval=-bound, maxval=bound)

    return {
        "w0": u(ks[0], (width, size0)), "b0": u(ks[1], (1, size0)),
        "w1": u(ks[2], (width, size1)), "b1": u(ks[3], (1, size1)),
        "w2": u(ks[4], (width, size2)), "b2": u(ks[5], (1, size2)),
    }


if __name__ == "__main__":
    key = jax.random.PRNGKey(0)
    k_t, k_p = jax.random.split(key)

    # PSST asserts width % 64 == 0 -> smallest width is 64.
    batch, seq, width = 4, 8, 64
    t_out = jax.random.normal(k_t, (batch, seq, width), dtype=jnp.float32)

    # Deterministic padding mask (True = padded); no fully-masked rows.
    lengths = jnp.array([8, 6, 5, 7], dtype=jnp.int32)
    mask = jnp.arange(seq, dtype=jnp.int32)[None, :] >= lengths[:, None]

    params = init_params(k_p, width)

    # multitask=True path
    y0, y1, y2, mem = psst_pool_and_heads(t_out, mask, params, multitask=True)
    jax.block_until_ready((y0, y1, y2, mem))

    # Plain-JAX reference (masked mean pooling + three linears).
    mask_f = mask.astype(jnp.float32)
    mem_ref = (t_out * (1.0 - mask_f)[:, :, None]).sum(axis=1) / (
        jnp.float32(seq) - mask_f.sum(axis=1, keepdims=True))
    ref0 = mem_ref @ params["w0"] + params["b0"]
    ref1 = mem_ref @ params["w1"] + params["b1"]
    ref2 = mem_ref @ params["w2"] + params["b2"]

    assert y0.shape == (batch, SIZE0)
    assert y1.shape == (batch, SIZE1)
    assert y2.shape == (batch, SIZE2)
    assert mem.shape == (batch, width)
    assert jnp.allclose(mem, mem_ref, atol=2e-5)
    assert jnp.allclose(y0, ref0, atol=2e-5)
    assert jnp.allclose(y1, ref1, atol=2e-5)
    assert jnp.allclose(y2, ref2, atol=2e-5)

    # multitask=False path: heads 0/1 are never computed inside the kernel.
    n0, n1, y2b, mem_b = psst_pool_and_heads(t_out, mask, params, multitask=False)
    assert n0 is None and n1 is None
    jax.block_until_ready((y2b, mem_b))
    assert jnp.allclose(y2b, ref2, atol=2e-5)
    assert jnp.allclose(mem_b, mem_ref, atol=2e-5)

    print("KERNEL_OK")
</pallas_src>

<mosaic_0001>
module attributes {stable_mosaic.version = 11 : i64} {
  func.func @_psst_pool_heads_kernel(%arg0: i32, %arg1: memref<8x8x64xf32, #tpu.memory_space<vmem>>, %arg2: memref<8x8xf32, #tpu.memory_space<vmem>>, %arg3: memref<64x128xf32, #tpu.memory_space<vmem>>, %arg4: memref<1x128xf32, #tpu.memory_space<vmem>>, %arg5: memref<8x128xf32, #tpu.memory_space<vmem>>, %arg6: memref<8x64xf32, #tpu.memory_space<vmem>>) attributes {dimension_semantics = [#tpu.dimension_semantics<parallel>], iteration_bounds = array<i64: 1>, scalar_prefetch = 0 : i64, scratch_operands = 0 : i64, tpu.core_type = #tpu.core_type<tc>, window_params = [{transform_indices = @transform_0, window_bounds = array<i64: 8, 8, 64>}, {transform_indices = @transform_1, window_bounds = array<i64: 8, 8>}, {pipeline_mode = #tpu.pipeline_mode<synchronous>, transform_indices = @transform_2, window_bounds = array<i64: 64, 128>}, {pipeline_mode = #tpu.pipeline_mode<synchronous>, transform_indices = @transform_3, window_bounds = array<i64: 1, 128>}, {transform_indices = @transform_4, window_bounds = array<i64: 8, 128>}, {transform_indices = @transform_5, window_bounds = array<i64: 8, 64>}]} {
    %c0 = arith.constant 0 : index
    %c0_0 = arith.constant 0 : index
    %c0_1 = arith.constant 0 : index
    %0 = vector.load %arg1[%c0, %c0_0, %c0_1] : memref<8x8x64xf32, #tpu.memory_space<vmem>>, vector<8x8x64xf32>
    %c0_2 = arith.constant 0 : index
    %c0_3 = arith.constant 0 : index
    %1 = vector.load %arg2[%c0_2, %c0_3] : memref<8x8xf32, #tpu.memory_space<vmem>>, vector<8x8xf32>
    %cst = arith.constant 1.000000e+00 : f32
    %2 = vector.broadcast %cst : f32 to vector<8x8xf32>
    %3 = arith.subf %2, %1 : vector<8x8xf32>
    %4 = vector.shape_cast %3 : vector<8x8xf32> to vector<8x8x1xf32>
    %5 = vector.broadcast %4 : vector<8x8x1xf32> to vector<8x8x64xf32>
    %6 = arith.mulf %0, %5 : vector<8x8x64xf32>
    %cst_4 = arith.constant dense<0.000000e+00> : vector<8x64xf32>
    %7 = vector.multi_reduction <add>, %6, %cst_4 [1] : vector<8x8x64xf32> to vector<8x64xf32>
    %cst_5 = arith.constant dense<0.000000e+00> : vector<8xf32>
    %8 = vector.multi_reduction <add>, %1, %cst_5 [1] : vector<8x8xf32> to vector<8xf32>
    %9 = vector.shape_cast %8 : vector<8xf32> to vector<8x1xf32>
    %cst_6 = arith.constant 8.000000e+00 : f32
    %10 = vector.broadcast %cst_6 : f32 to vector<8x1xf32>
    %11 = arith.subf %10, %9 : vector<8x1xf32>
    %12 = vector.broadcast %11 : vector<8x1xf32> to vector<8x64xf32>
    %13 = arith.divf %7, %12 : vector<8x64xf32>
    %c0_7 = arith.constant 0 : index
    %c0_8 = arith.constant 0 : index
    %14 = vector.load %arg6[%c0_7, %c0_8] : memref<8x64xf32, #tpu.memory_space<vmem>>, vector<8x64xf32>
    tpu.vector_store %arg6[%c0_7, %c0_8], %13 {strides = array<i32>} : memref<8x64xf32, #tpu.memory_space<vmem>>, vector<8x64xf32>,
    %c0_9 = arith.constant 0 : index
    %c0_10 = arith.constant 0 : index
    %15 = vector.load %arg3[%c0_9, %c0_10] : memref<64x128xf32, #tpu.memory_space<vmem>>, vector<64x128xf32>
    %cst_11 = arith.constant dense<0.000000e+00> : vector<8x128xf32>
    %16 = tpu.matmul %13, %15, %cst_11 {dimension_numbers = #tpu.dot_dimension_numbers<[1], [0], [0], [1], [0, 0, 1, 1], [], []>} : vector<8x64xf32>, vector<64x128xf32>, vector<8x128xf32> -> vector<8x128xf32>
    %c0_12 = arith.constant 0 : index
    %c0_13 = arith.constant 0 : index
    %17 = vector.load %arg4[%c0_12, %c0_13] : memref<1x128xf32, #tpu.memory_space<vmem>>, vector<1x128xf32>
    %18 = vector.broadcast %17 : vector<1x128xf32> to vector<8x128xf32>
    %19 = arith.addf %16, %18 : vector<8x128xf32>
    %c0_14 = arith.constant 0 : index
    %c0_15 = arith.constant 0 : index
    %20 = vector.load %arg5[%c0_14, %c0_15] : memref<8x128xf32, #tpu.memory_space<vmem>>, vector<8x128xf32>
    tpu.vector_store %arg5[%c0_14, %c0_15], %19 {strides = array<i32>} : memref<8x128xf32, #tpu.memory_space<vmem>>, vector<8x128xf32>,
    return
  }
  func.func @transform_0(%arg0: i32) -> (i32, i32, i32) {
    %c0_i32 = arith.constant 0 : i32
    %c0_i32_0 = arith.constant 0 : i32
    %c0_i32_1 = arith.constant 0 : i32
    return %arg0, %c0_i32, %c0_i32_0 : i32, i32, i32
  }
  func.func @transform_1(%arg0: i32) -> (i32, i32) {
    %c0_i32 = arith.constant 0 : i32
    %c0_i32_0 = arith.constant 0 : i32
    return %arg0, %c0_i32 : i32, i32
  }
  func.func @transform_2(%arg0: i32) -> (i32, i32) {
    %c0_i32 = arith.constant 0 : i32
    %c0_i32_0 = arith.constant 0 : i32
    %c0_i32_1 = arith.constant 0 : i32
    return %c0_i32, %c0_i32_0 : i32, i32
  }
  func.func @transform_3(%arg0: i32) -> (i32, i32) {
    %c0_i32 = arith.constant 0 : i32
    %c0_i32_0 = arith.constant 0 : i32
    %c0_i32_1 = arith.constant 0 : i32
    return %c0_i32, %c0_i32_0 : i32, i32
  }
  func.func @transform_4(%arg0: i32) -> (i32, i32) {
    %c0_i32 = arith.constant 0 : i32
    %c0_i32_0 = arith.constant 0 : i32
    return %arg0, %c0_i32 : i32, i32
  }
  func.func @transform_5(%arg0: i32) -> (i32, i32) {
    %c0_i32 = arith.constant 0 : i32
    %c0_i32_0 = arith.constant 0 : i32
    return %arg0, %c0_i32 : i32, i32
  }
}

</mosaic_0001>

<llo_original>
// kernel: tpu_custom_call.1
$region0: #{tpu_custom_call.1}
  #allocation0 [shape = 'u32[]', space=smem, size = 0x4, offset = 0x4, fixed_abs, tag = 'smem constant byte address 0x4 - core index']
  #allocation1 [shape = 'u32[72,128]{1,0:T(1,128)}', space=vmem, size = 0x9000, scoped, tag = 'internal scratch']
  %s0 = inlined_call_operand.hbm [shape: f32[8,8,64], index: 0, kind: input, shape index: {}]
  %s1 = inlined_call_operand.hbm [shape: f32[8,8], index: 1, kind: input, shape index: {}]
  %s2 = inlined_call_operand.hbm [shape: f32[64,128], index: 2, kind: input, shape index: {}]
  %s3 = inlined_call_operand.vmem [shape: f32[1,128], index: 3, kind: input, shape index: {}]
  %s4 = inlined_call_operand.hbm [shape: f32[8,128], index: 4, kind: output, shape index: {0}]
  %s5 = inlined_call_operand.hbm [shape: f32[8,64], index: 5, kind: output, shape index: {1}]
  %6 = xla_tuple %s4, %s5
  %s7 = sld [smem:[#allocation0]]
  $region46: #{tpu_custom_call.1} parent=0
    _
  %s9 = ssub.s32 1, %s7
  %s10 = scalar_select 0, %s9, %s7
  $region1: #{tpu_custom_call.1} parent=0
    #allocation2 [shape = 'u8[32768]{0}', space=vmem, size = 0x8000, scoped, tag = 'input window, operand 0, single buffered']
    #allocation3 [shape = 's32[1]{0}', space=sflag, size = 0x4, scoped, tag = 'scoped memory for tpu_custom_call.1']
    #allocation4 [shape = 's32[1]{0}', space=sflag, size = 0x4, scoped, tag = 'scoped memory for tpu_custom_call.1']
    #allocation5 [shape = 'u8[4096]{0}', space=vmem, size = 0x1000, scoped, tag = 'input window, operand 1, single buffered']
    #allocation6 [shape = 's32[1]{0}', space=sflag, size = 0x4, scoped, tag = 'scoped memory for tpu_custom_call.1']
    #allocation7 [shape = 'u8[32768]{0}', space=vmem, size = 0x8000, scoped, tag = 'input window, operand 2, single buffered']
    #allocation8 [shape = 'u8[4096]{0}', space=vmem, size = 0x1000, scoped, tag = 'output window, operand 0, single buffered']
    #allocation9 [shape = 'u8[4096]{0}', space=vmem, size = 0x1000, scoped, tag = 'output window, operand 1, single buffered']
    #allocation10 [shape = 's32[1]{0}', space=sflag, size = 0x4, scoped, tag = 'scoped memory for tpu_custom_call.1']
    %11 = vsyncpa [#allocation3], 0
    %12 = vsyncpa [#allocation6], 0
    %13 = vsyncpa [#allocation4], 0
    %14 = vsyncpa [#allocation10], 0
    // Predicated region
    $region2: #{tpu_custom_call.1} parent=1 // pred_check
      _
    $region3: #{tpu_custom_call.1} parent=1 // pred_check_branch
      %16 = sbr.rel (0) target = $region5
    $region4: #{tpu_custom_call.1} parent=1 // pred_region
      %18 = vsyncadd [#allocation3], 0
      %s19 = sshll.u32 %s0, 4
      %s20 = int_to_ptr.hbm [resolvable:$true] %s19
      %s21 = sshll.u32 [#allocation2], 4
      %s22 = int_to_ptr.vmem [resolvable:$true] %s21
      %27 = dma.hbm_to_vmem [thread:$0]  %s20, 1024, %s22, [#allocation3], 128, 128, 8
    $region5: #{tpu_custom_call.1} parent=1 // pred_fallthru
      _
    // Predicated region
    $region6: #{tpu_custom_call.1} parent=1 // pred_check
      _
    $region7: #{tpu_custom_call.1} parent=1 // pred_check_branch
      %29 = sbr.rel (0) target = $region9
    $region8: #{tpu_custom_call.1} parent=1 // pred_region
      %31 = vsyncadd [#allocation6], 0
      %s33 = sshll.u32 %s1, 4
      %s34 = int_to_ptr.hbm [resolvable:$true] %s33
      %s35 = sshll.u32 [#allocation5], 4
      %s36 = int_to_ptr.vmem [resolvable:$true] %s35
      %38 = dma.hbm_to_vmem [thread:$0]  %s34, 128, %s36, [#allocation6]
    $region9: #{tpu_custom_call.1} parent=1 // pred_fallthru
      _
    // Predicated region
    $region10: #{tpu_custom_call.1} parent=1 // pred_check
      _
    $region11: #{tpu_custom_call.1} parent=1 // pred_check_branch
      %40 = sbr.rel (0) target = $region13
    $region12: #{tpu_custom_call.1} parent=1 // pred_region
      %42 = vsyncadd [#allocation6], 0
      %s43 = sshll.u32 %s2, 4
      %s44 = int_to_ptr.hbm [resolvable:$true] %s43
      %s45 = sshll.u32 [#allocation7], 4
      %s46 = int_to_ptr.vmem [resolvable:$true] %s45
      %51 = dma.hbm_to_vmem [thread:$0]  %s44, 1024, %s46, [#allocation6], 128, 128, 8
    $region13: #{tpu_custom_call.1} parent=1 // pred_fallthru
      _
    // Predicated region
    $region14: #{tpu_custom_call.1} parent=1 // pred_check
      _
    $region15: #{tpu_custom_call.1} parent=1 // pred_check_branch
      %53 = sbr.rel (0) target = $region17
    $region16: #{tpu_custom_call.1} parent=1 // pred_region
      _
    $region17: #{tpu_custom_call.1} parent=1 // pred_fallthru
      _
    // Predicated region
    $region18: #{tpu_custom_call.1} parent=1 // pred_check
      _
    $region19: #{tpu_custom_call.1} parent=1 // pred_check_branch
      %55 = sbr.rel (0) target = $region21
    $region20: #{tpu_custom_call.1} parent=1 // pred_region
      %57 = dma.done [#allocation3], 1024
    $region21: #{tpu_custom_call.1} parent=1 // pred_fallthru
      _
    // Predicated region
    $region22: #{tpu_custom_call.1} parent=1 // pred_check
      _
    $region23: #{tpu_custom_call.1} parent=1 // pred_check_branch
      %59 = sbr.rel (0) target = $region25
    $region24: #{tpu_custom_call.1} parent=1 // pred_region
      %61 = dma.done [#allocation6], 128
    $region25: #{tpu_custom_call.1} parent=1 // pred_fallthru
      _
    // Predicated region
    $region26: #{tpu_custom_call.1} parent=1 // pred_check
      _
    $region27: #{tpu_custom_call.1} parent=1 // pred_check_branch
      %63 = sbr.rel (0) target = $region29
    $region28: #{tpu_custom_call.1} parent=1 // pred_region
      %65 = dma.done [#allocation6], 1024
    $region29: #{tpu_custom_call.1} parent=1 // pred_fallthru
      _
    %v66 = vld [vmem:[#allocation2] sm:$0xff]
    %v67 = vld [vmem:[#allocation2 + $0x8] sm:$0xff]
    %v68 = vld [vmem:[#allocation2 + $0x10] sm:$0xff]
    %v69 = vld [vmem:[#allocation2 + $0x18] sm:$0xff]
    %v70 = vld [vmem:[#allocation2 + $0x20] sm:$0xff]
    %v71 = vld [vmem:[#allocation2 + $0x28] sm:$0xff]
    %v72 = vld [vmem:[#allocation2 + $0x30] sm:$0xff]
    %v73 = vld [vmem:[#allocation2 + $0x38] sm:$0xff]
    %v74 = vld [vmem:[#allocation5] sm:$0xff]
    %v75 = vsub.f32 1.0, %v74
    %v76 = vperm.slane %v75, 0
    %v77 = vlaneseq
    %v78 = vshrl.u32 %v77, 7
    %80 = vset.pattern.permute.xlu0 %v78
    %81 = vperm.xlu0 %80, %v76
    %v82 = vpop.permute.xlu0 %81
    %v83 = vperm.slane %v75, 1
    %v84 = vlaneseq
    %v85 = vshrl.u32 %v84, 7
    %87 = vset.pattern.permute.xlu0 %v85
    %88 = vperm.xlu0 %87, %v83
    %v89 = vpop.permute.xlu0 %88
    %v90 = vperm.slane %v75, 2
    %v91 = vlaneseq
    %v92 = vshrl.u32 %v91, 7
    %94 = vset.pattern.permute.xlu0 %v92
    %95 = vperm.xlu0 %94, %v90
    %v96 = vpop.permute.xlu0 %95
    %v97 = vperm.slane %v75, 3
    %v98 = vlaneseq
    %v99 = vshrl.u32 %v98, 7
    %101 = vset.pattern.permute.xlu0 %v99
    %102 = vperm.xlu0 %101, %v97
    %v103 = vpop.permute.xlu0 %102
    %v104 = vperm.slane %v75, 4
    %v105 = vlaneseq
    %v106 = vshrl.u32 %v105, 7
    %108 = vset.pattern.permute.xlu0 %v106
    %109 = vperm.xlu0 %108, %v104
    %v110 = vpop.permute.xlu0 %109
    %v111 = vperm.slane %v75, 5
    %v112 = vlaneseq
    %v113 = vshrl.u32 %v112, 7
    %115 = vset.pattern.permute.xlu0 %v113
    %116 = vperm.xlu0 %115, %v111
    %v117 = vpop.permute.xlu0 %116
    %v118 = vperm.slane %v75, 6
    %v119 = vlaneseq
    %v120 = vshrl.u32 %v119, 7
    %122 = vset.pattern.permute.xlu0 %v120
    %123 = vperm.xlu0 %122, %v118
    %v124 = vpop.permute.xlu0 %123
    %v125 = vperm.slane %v75, 7
    %v126 = vlaneseq
    %v127 = vshrl.u32 %v126, 7
    %129 = vset.pattern.permute.xlu0 %v127
    %130 = vperm.xlu0 %129, %v125
    %v131 = vpop.permute.xlu0 %130
    %v132 = vmul.f32 %v66, %v82
    %v133 = vmul.f32 %v67, %v89
    %v134 = vmul.f32 %v68, %v96
    %v135 = vmul.f32 %v69, %v103
    %v136 = vmul.f32 %v70, %v110
    %v137 = vmul.f32 %v71, %v117
    %v138 = vmul.f32 %v72, %v124
    %v139 = vmul.f32 %v73, %v131
    %vm140 = vcmask 523264
    %v141 = vsel %vm140, %v132, 0.0
    %v142 = vrot.slane %v141, 4
    %v143 = vadd.f32 %v141, %v142
    %v144 = vrot.slane %v143, 2
    %v145 = vadd.f32 %v143, %v144
    %v146 = vrot.slane %v145, 1
    %v147 = vadd.f32 %v145, %v146
    %v148 = vsel %vm140, %v133, 0.0
    %v149 = vrot.slane %v148, 4
    %v150 = vadd.f32 %v148, %v149
    %v151 = vrot.slane %v150, 2
    %v152 = vadd.f32 %v150, %v151
    %v153 = vrot.slane %v152, 1
    %v154 = vadd.f32 %v152, %v153
    %v155 = vsel %vm140, %v134, 0.0
    %v156 = vrot.slane %v155, 4
    %v157 = vadd.f32 %v155, %v156
    %v158 = vrot.slane %v157, 2
    %v159 = vadd.f32 %v157, %v158
    %v160 = vrot.slane %v159, 1
    %v161 = vadd.f32 %v159, %v160
    %v162 = vsel %vm140, %v135, 0.0
    %v163 = vrot.slane %v162, 4
    %v164 = vadd.f32 %v162, %v163
    %v165 = vrot.slane %v164, 2
    %v166 = vadd.f32 %v164, %v165
    %v167 = vrot.slane %v166, 1
    %v168 = vadd.f32 %v166, %v167
    %v169 = vsel %vm140, %v136, 0.0
    %v170 = vrot.slane %v169, 4
    %v171 = vadd.f32 %v169, %v170
    %v172 = vrot.slane %v171, 2
    %v173 = vadd.f32 %v171, %v172
    %v174 = vrot.slane %v173, 1
    %v175 = vadd.f32 %v173, %v174
    %v176 = vsel %vm140, %v137, 0.0
    %v177 = vrot.slane %v176, 4
    %v178 = vadd.f32 %v176, %v177
    %v179 = vrot.slane %v178, 2
    %v180 = vadd.f32 %v178, %v179
    %v181 = vrot.slane %v180, 1
    %v182 = vadd.f32 %v180, %v181
    %v183 = vsel %vm140, %v138, 0.0
    %v184 = vrot.slane %v183, 4
    %v185 = vadd.f32 %v183, %v184
    %v186 = vrot.slane %v185, 2
    %v187 = vadd.f32 %v185, %v186
    %v188 = vrot.slane %v187, 1
    %v189 = vadd.f32 %v187, %v188
    %v190 = vsel %vm140, %v139, 0.0
    %v191 = vrot.slane %v190, 4
    %v192 = vadd.f32 %v190, %v191
    %v193 = vrot.slane %v192, 2
    %v194 = vadd.f32 %v192, %v193
    %v195 = vrot.slane %v194, 1
    %v196 = vadd.f32 %v194, %v195
    %vm197 = vcmask 64512
    %v198 = vsel %vm197, %v74, 0.0
    %199 = vadd.xlane.f32.xlu0 %v198
    %v200 = vpop.xlane.xlu0 %199
    %v201 = vsub.f32 8.0, %v200
    %v203 = vrot.slane %v201, 1
    %v204 = vrot.slane %v201, 2
    %v205 = vrot.slane %v201, 3
    %v206 = vrot.slane %v201, 4
    %v207 = vrot.slane %v201, 5
    %v208 = vrot.slane %v201, 6
    %v209 = vrot.slane %v201, 7
    %v218 = vrcp.pop %v201
    %v219 = vmul.f32 %v201, %v218
    %v220 = vsub.f32 1.0, %v219
    %v221 = vmul.f32 %v218, %v220
    %v222 = vadd.f32 %v218, %v221
    %vm223 = vweird.f32 %v201
    %vm224 = vweird.f32 %v218
    %vm225 = vmor %vm223, %vm224
    %v226 = vsel %vm225, %v218, %v222
    %v227 = vand.u32 2147483647, %v201
    %vm228 = vcmp.eq.f32.partialorder %v227, 8.507059e+37
    %v229 = vand.u32 %v201, 2147483648
    %v230 = vor.u32 1.1754944e-38, %v229
    %v231 = vsel %vm228, %v230, %v226
    %v232 = vmul.f32 %v147, %v231
    %v233 = vrcp.pop %v203
    %v234 = vmul.f32 %v203, %v233
    %v235 = vsub.f32 1.0, %v234
    %v236 = vmul.f32 %v233, %v235
    %v237 = vadd.f32 %v233, %v236
    %vm238 = vweird.f32 %v203
    %vm239 = vweird.f32 %v233
    %vm240 = vmor %vm238, %vm239
    %v241 = vsel %vm240, %v233, %v237
    %v242 = vand.u32 2147483647, %v203
    %vm243 = vcmp.eq.f32.partialorder %v242, 8.507059e+37
    %v244 = vand.u32 %v203, 2147483648
    %v245 = vor.u32 1.1754944e-38, %v244
    %v246 = vsel %vm243, %v245, %v241
    %v247 = vmul.f32 %v154, %v246
    %v248 = vrcp.pop %v204
    %v249 = vmul.f32 %v204, %v248
    %v250 = vsub.f32 1.0, %v249
    %v251 = vmul.f32 %v248, %v250
    %v252 = vadd.f32 %v248, %v251
    %vm253 = vweird.f32 %v204
    %vm254 = vweird.f32 %v248
    %vm255 = vmor %vm253, %vm254
    %v256 = vsel %vm255, %v248, %v252
    %v257 = vand.u32 2147483647, %v204
    %vm258 = vcmp.eq.f32.partialorder %v257, 8.507059e+37
    %v259 = vand.u32 %v204, 2147483648
    %v260 = vor.u32 1.1754944e-38, %v259
    %v261 = vsel %vm258, %v260, %v256
    %v262 = vmul.f32 %v161, %v261
    %v263 = vrcp.pop %v205
    %v264 = vmul.f32 %v205, %v263
    %v265 = vsub.f32 1.0, %v264
    %v266 = vmul.f32 %v263, %v265
    %v267 = vadd.f32 %v263, %v266
    %vm268 = vweird.f32 %v205
    %vm269 = vweird.f32 %v263
    %vm270 = vmor %vm268, %vm269
    %v271 = vsel %vm270, %v263, %v267
    %v272 = vand.u32 2147483647, %v205
    %vm273 = vcmp.eq.f32.partialorder %v272, 8.507059e+37
    %v274 = vand.u32 %v205, 2147483648
    %v275 = vor.u32 1.1754944e-38, %v274
    %v276 = vsel %vm273, %v275, %v271
    %v277 = vmul.f32 %v168, %v276
    %v278 = vrcp.pop %v206
    %v279 = vmul.f32 %v206, %v278
    %v280 = vsub.f32 1.0, %v279
    %v281 = vmul.f32 %v278, %v280
    %v282 = vadd.f32 %v278, %v281
    %vm283 = vweird.f32 %v206
    %vm284 = vweird.f32 %v278
    %vm285 = vmor %vm283, %vm284
    %v286 = vsel %vm285, %v278, %v282
    %v287 = vand.u32 2147483647, %v206
    %vm288 = vcmp.eq.f32.partialorder %v287, 8.507059e+37
    %v289 = vand.u32 %v206, 2147483648
    %v290 = vor.u32 1.1754944e-38, %v289
    %v291 = vsel %vm288, %v290, %v286
    %v292 = vmul.f32 %v175, %v291
    %v293 = vrcp.pop %v207
    %v294 = vmul.f32 %v207, %v293
    %v295 = vsub.f32 1.0, %v294
    %v296 = vmul.f32 %v293, %v295
    %v297 = vadd.f32 %v293, %v296
    %vm298 = vweird.f32 %v207
    %vm299 = vweird.f32 %v293
    %vm300 = vmor %vm298, %vm299
    %v301 = vsel %vm300, %v293, %v297
    %v302 = vand.u32 2147483647, %v207
    %vm303 = vcmp.eq.f32.partialorder %v302, 8.507059e+37
    %v304 = vand.u32 %v207, 2147483648
    %v305 = vor.u32 1.1754944e-38, %v304
    %v306 = vsel %vm303, %v305, %v301
    %v307 = vmul.f32 %v182, %v306
    %v308 = vrcp.pop %v208
    %v309 = vmul.f32 %v208, %v308
    %v310 = vsub.f32 1.0, %v309
    %v311 = vmul.f32 %v308, %v310
    %v312 = vadd.f32 %v308, %v311
    %vm313 = vweird.f32 %v208
    %vm314 = vweird.f32 %v308
    %vm315 = vmor %vm313, %vm314
    %v316 = vsel %vm315, %v308, %v312
    %v317 = vand.u32 2147483647, %v208
    %vm318 = vcmp.eq.f32.partialorder %v317, 8.507059e+37
    %v319 = vand.u32 %v208, 2147483648
    %v320 = vor.u32 1.1754944e-38, %v319
    %v321 = vsel %vm318, %v320, %v316
    %v322 = vmul.f32 %v189, %v321
    %v323 = vrcp.pop %v209
    %v324 = vmul.f32 %v209, %v323
    %v325 = vsub.f32 1.0, %v324
    %v326 = vmul.f32 %v323, %v325
    %v327 = vadd.f32 %v323, %v326
    %vm328 = vweird.f32 %v209
    %vm329 = vweird.f32 %v323
    %vm330 = vmor %vm328, %vm329
    %v331 = vsel %vm330, %v323, %v327
    %v332 = vand.u32 2147483647, %v209
    %vm333 = vcmp.eq.f32.partialorder %v332, 8.507059e+37
    %v334 = vand.u32 %v209, 2147483648
    %v335 = vor.u32 1.1754944e-38, %v334
    %v336 = vsel %vm333, %v335, %v331
    %v337 = vmul.f32 %v196, %v336
    %v346 = vrot.slane %v247, 7
    %vm347 = vcmask 1041409
    %v348 = vsel %vm347, %v346, %v232
    %v349 = vrot.slane %v262, 6
    %vm350 = vcmask 1042434
    %v351 = vsel %vm350, %v349, %v348
    %v352 = vrot.slane %v277, 5
    %vm353 = vcmask 1043459
    %v354 = vsel %vm353, %v352, %v351
    %v355 = vrot.slane %v292, 4
    %vm356 = vcmask 1044484
    %v357 = vsel %vm356, %v355, %v354
    %v358 = vrot.slane %v307, 3
    %vm359 = vcmask 1045509
    %v360 = vsel %vm359, %v358, %v357
    %v361 = vrot.slane %v322, 2
    %vm362 = vcmask 1046534
    %v363 = vsel %vm362, %v361, %v360
    %v364 = vrot.slane %v337, 1
    %vm365 = vcmask 1047559
    %v366 = vsel %vm365, %v364, %v363
    %368 = vst.msk [vmem:[#allocation9] sm:$0xff] %vm140, %v366
    %v369 = vld [vmem:[#allocation7] sm:$0xff]
    %v370 = vld [vmem:[#allocation7 + $0x8] sm:$0xff]
    %v371 = vld [vmem:[#allocation7 + $0x10] sm:$0xff]
    %v372 = vld [vmem:[#allocation7 + $0x18] sm:$0xff]
    %v373 = vld [vmem:[#allocation7 + $0x20] sm:$0xff]
    %v374 = vld [vmem:[#allocation7 + $0x28] sm:$0xff]
    %v375 = vld [vmem:[#allocation7 + $0x30] sm:$0xff]
    %v376 = vld [vmem:[#allocation7 + $0x38] sm:$0xff]
    %v377 = vld [vmem:[%s3] sm:$0x1]
    %v379 = vperm.slane %v377, 0
    %v381 = vsel %vm140, %v366, 0
    %383 = vmatpush.msra.mxu0 0.0
    %384 = vmatpush.msra.mxu0 0.0
    %385 = vmatpush.msra.mxu0 0.0
    %386 = vmatpush.msra.mxu0 0.0
    %387 = vmatpush.msra.mxu0 0.0
    %388 = vmatpush.msra.mxu0 0.0
    %389 = vmatpush.msra.mxu0 0.0
    %390 = vmatpush.msra.mxu0 0.0
    %391 = vmatpush.msra.mxu0 %v376
    %392 = vmatpush.msra.mxu0 %v375
    %393 = vmatpush.msra.mxu0 %v374
    %394 = vmatpush.msra.mxu0 %v373
    %395 = vmatpush.msra.mxu0 %v372
    %396 = vmatpush.msra.mxu0 %v371
    %397 = vmatpush.msra.mxu0 %v370
    %398 = vmatpush.msra.mxu0 %v369
    %399 = vmatmul.f32.gmra.mxu0 %v381
    %v400 = vpop.f32.mrf.mxu0
    %v401 = vadd.f32 %v379, %v400
    %402 = vdwg.mxu0
    %403 = vst [vmem:[#allocation8] sm:$0xff] %v401
    // Predicated region
    $region30: #{tpu_custom_call.1} parent=1 // pred_check
      _
    $region31: #{tpu_custom_call.1} parent=1 // pred_check_branch
      %405 = sbr.rel (0) target = $region33
    $region32: #{tpu_custom_call.1} parent=1 // pred_region
      %407 = vsyncadd [#allocation4], 0
      %s409 = sshll.u32 [#allocation8], 4
      %s410 = int_to_ptr.vmem [resolvable:$true] %s409
      %s411 = sshll.u32 %s4, 4
      %s412 = int_to_ptr.hbm [resolvable:$true] %s411
      %414 = dma.vmem_to_hbm [thread:$0]  %s410, 128, %s412, [#allocation4]
    $region33: #{tpu_custom_call.1} parent=1 // pred_fallthru
      _
    // Predicated region
    $region34: #{tpu_custom_call.1} parent=1 // pred_check
      _
    $region35: #{tpu_custom_call.1} parent=1 // pred_check_branch
      %416 = sbr.rel (0) target = $region37
    $region36: #{tpu_custom_call.1} parent=1 // pred_region
      %418 = vsyncadd [#allocation10], 0
      %s420 = sshll.u32 [#allocation9], 4
      %s421 = int_to_ptr.vmem [resolvable:$true] %s420
      %s422 = sshll.u32 %s5, 4
      %s423 = int_to_ptr.hbm [resolvable:$true] %s422
      %425 = dma.vmem_to_hbm [thread:$0]  %s421, 128, %s423, [#allocation10]
    $region37: #{tpu_custom_call.1} parent=1 // pred_fallthru
      _
    // Predicated region
    $region38: #{tpu_custom_call.1} parent=1 // pred_check
      _
    $region39: #{tpu_custom_call.1} parent=1 // pred_check_branch
      %427 = sbr.rel (0) target = $region41
    $region40: #{tpu_custom_call.1} parent=1 // pred_region
      %429 = dma.done [#allocation4], 128
    $region41: #{tpu_custom_call.1} parent=1 // pred_fallthru
      _
    // Predicated region
    $region42: #{tpu_custom_call.1} parent=1 // pred_check
      _
    $region43: #{tpu_custom_call.1} parent=1 // pred_check_branch
      %431 = sbr.rel (0) target = $region45
    $region44: #{tpu_custom_call.1} parent=1 // pred_region
      %433 = dma.done [#allocation10], 128
    $region45: #{tpu_custom_call.1} parent=1 // pred_fallthru
      _
    %434 = vsyncpa [#allocation3], 1
    %435 = vsyncpa [#allocation6], 1
    %436 = vsyncpa [#allocation4], 1
    %437 = vsyncpa [#allocation10], 1

</llo_original>
